<compile_context>
chip_gen: v6e
topology: v6e:2x2x1
jax: 0.10.0
libtpu: 0.0.40
codegen_flags: <defaults>
</compile_context>

<pallas_src>
import functools

import jax
import jax.numpy as jnp
from jax import lax
from jax.experimental import pallas as pl
from jax.experimental.pallas import tpu as pltpu

_LANE = 128
_SUBLANE = 8
_SUBLANE_BF16 = 16


def _joiner_kernel(src_ref, tgt_ref, w_ref, b_ref, out_ref, act_ref, *,
                   activation):
    """One grid step = one (batch, T-tile, V-tile) output slab.

    src_ref : (1, t_tile, Dp)         f32   source encodings tile
    tgt_ref : (1, Up, Dp)             f32   full (padded) target for this batch
    w_ref   : (Dp, v_tile)            bf16  pre-transposed / pre-cast weight
    b_ref   : (1, v_tile)             f32   bias tile
    out_ref : (1, t_tile, Up, v_tile) out_dtype
    act_ref : (t_tile * Up, Dp)       bf16  VMEM scratch (activated joint)
    """
    # The activated joint is V-invariant: compute it once per (batch, T-tile)
    # at the start of the (innermost, sequential) V sweep and reuse it.
    @pl.when(pl.program_id(2) == 0)
    def _():
        src = src_ref[0]                               # (t_tile, Dp)
        tgt = tgt_ref[0]                               # (Up, Dp)
        # Broadcast add on the VPU in f32 (v5e has no bf16 VPU).
        joint = src[:, None, :] + tgt[None, :, :]      # (t_tile, Up, Dp)
        # dropout(p=0.0) is the identity; p > 0 is rejected in the wrapper.
        if activation == "relu":
            act = jnp.maximum(joint, 0.0)
        else:  # "tanh"
            act = jnp.tanh(joint)
        act_ref[...] = act.reshape(act_ref.shape).astype(jnp.bfloat16)

    # (t_tile*Up, Dp) x (Dp, v_tile) on the MXU, accumulating in f32.
    out2d = jnp.dot(act_ref[...], w_ref[...],
                    preferred_element_type=jnp.float32)
    out2d = out2d + b_ref[...]                         # (1, v_tile) broadcast
    t_tile, up = out_ref.shape[1], out_ref.shape[2]
    out_ref[0] = out2d.reshape(t_tile, up, -1).astype(out_ref.dtype)


def _round_up(x, m):
    return -(-x // m) * m


def _is_big_vmem_gen():
    """True for v4/v5e/v6e (128 MiB VMEM); conservative (v7x-like) otherwise."""
    try:
        kind = jax.devices()[0].device_kind.lower()
    except Exception:
        return False
    return ("v4" in kind) or ("v5" in kind) or ("v6" in kind)


def _choose_v_tile(vp):
    """Prefer 256-wide (or wider) N tiles to fill the 256x256 MXUs on
    v6e/v7x; vp is a multiple of 128, and of 256 whenever vp > 256."""
    if vp <= 512:
        return vp
    if vp % 512 == 0:
        return 512
    if vp % 256 == 0:
        return 256
    return 128


def _choose_t_tile(t, up, dp, v_tile, out_itemsize, budget_bytes):
    """Largest sublane-aligned t_tile whose conservative VMEM footprint
    (double-buffered tiles + ALL in-kernel temporaries) fits the budget."""
    def footprint(tt):
        return (
            2 * up * dp * 4                           # target tile (dbl buf)
            + 2 * dp * v_tile * 2                     # weight tile bf16 (dbl buf)
            + 2 * v_tile * 4                          # bias tile (dbl buf)
            + 2 * tt * dp * 4                         # source tile (dbl buf)
            + 2 * tt * up * v_tile * out_itemsize     # output tile (dbl buf)
            + tt * up * dp * 2                        # bf16 activated-joint scratch
            + tt * up * dp * 8                        # f32 joint + activation temps
            + tt * up * v_tile * (4 + out_itemsize))  # f32 out2d + cast copy

    t_cap = min(_round_up(t, _SUBLANE), 1024)
    best = _SUBLANE
    tt = _SUBLANE
    while tt <= t_cap:
        if footprint(tt) <= budget_bytes:
            best = tt
        tt += _SUBLANE
    return best, footprint(best)


@functools.partial(jax.jit,
                   static_argnames=("activation", "dropout_p", "out_dtype"))
def joiner_forward(source_encodings, source_lengths, target_encodings,
                   target_lengths, weight, bias, *,
                   activation="relu", dropout_p=0.0, out_dtype=jnp.bfloat16):
    """RNN-T joiner forward.

    source_encodings: (B, T, D) float32
    target_encodings: (B, U, D) float32
    weight:           (V, D)    float32  (PyTorch nn.Linear layout)
    bias:             (V,)      float32
    Returns (output (B, T, U, V) in `out_dtype`, source_lengths, target_lengths).
    """
    assert activation in ("relu", "tanh"), activation
    # TODO(synk): BroadcastDropout with p > 0 (training-time stochastic
    # masking) is not implemented; p == 0.0 (the module default) is identity.
    assert dropout_p == 0.0, "dropout_p > 0 is not supported by this kernel"
    # TODO(synk): for very long target sequences U, add a U-tile grid axis so
    # the joint temp scales with u_tile rather than U (matters on v7x 64 MiB).

    B, T, D = source_encodings.shape
    _, U, _ = target_encodings.shape
    V = weight.shape[0]
    out_dtype = jnp.dtype(out_dtype)
    out_itemsize = out_dtype.itemsize

    # --- Padding: D to lane, V to lane (256 when >256 so 256-wide tiles
    #     divide), U to bf16-sublane. Exact: padded rows/cols are zero. ---
    Dp = _round_up(D, _LANE)
    Vp = _round_up(V, _LANE) if V <= 2 * _LANE else _round_up(V, 2 * _LANE)
    Up = _round_up(U, _SUBLANE_BF16)

    src = source_encodings.astype(jnp.float32)
    tgt = target_encodings.astype(jnp.float32)
    w = weight.astype(jnp.float32)
    b = bias.astype(jnp.float32)

    if Dp != D:
        src = jnp.pad(src, ((0, 0), (0, 0), (0, Dp - D)))
        tgt = jnp.pad(tgt, ((0, 0), (0, 0), (0, Dp - D)))
        w = jnp.pad(w, ((0, 0), (0, Dp - D)))
    if Up != U:
        tgt = jnp.pad(tgt, ((0, 0), (0, Up - U), (0, 0)))
    if Vp != V:
        w = jnp.pad(w, ((0, Vp - V), (0, 0)))
        b = jnp.pad(b, ((0, Vp - V),))

    # Pre-transpose + pre-cast the weight ONCE in XLA: (V, D) -> (Dp, Vp) bf16.
    w_t = w.T.astype(jnp.bfloat16)
    b2d = b.reshape(1, Vp)

    # --- Tile sizes from a per-generation VMEM budget ---
    big_vmem = _is_big_vmem_gen()
    budget = (64 * 2**20) if big_vmem else (40 * 2**20)
    v_tile = _choose_v_tile(Vp)
    t_tile, est_bytes = _choose_t_tile(T, Up, Dp, v_tile, out_itemsize, budget)

    Tp = _round_up(T, t_tile)
    if Tp != T:
        src = jnp.pad(src, ((0, 0), (0, Tp - T), (0, 0)))

    # V innermost so the activated-joint scratch is reused across V-tiles.
    grid = (B, Tp // t_tile, Vp // v_tile)
    n_t_tiles = Tp // t_tile

    phys_cap = (120 * 2**20) if big_vmem else (56 * 2**20)
    vmem_limit = int(min(phys_cap, max(32 * 2**20, est_bytes + (2 << 20))))

    cost = pl.CostEstimate(
        flops=2 * B * Tp * Up * Dp * Vp,
        transcendentals=(B * Tp * Up * Dp if activation == "tanh" else 0),
        bytes_accessed=(B * Tp * Up * Vp * out_itemsize      # output write
                        + B * Tp * Dp * 4                     # source (read once)
                        + B * Up * Dp * 4                     # target (read once/batch)
                        + B * n_t_tiles * (Dp * Vp * 2 + Vp * 4)))  # weight/bias re-stream

    kernel = functools.partial(_joiner_kernel, activation=activation)

    out_padded = pl.pallas_call(
        kernel,
        out_shape=jax.ShapeDtypeStruct((B, Tp, Up, Vp), out_dtype),
        grid_spec=pltpu.PrefetchScalarGridSpec(
            num_scalar_prefetch=0,
            grid=grid,
            in_specs=[
                pl.BlockSpec((1, t_tile, Dp), lambda bi, ti, vj: (bi, ti, 0)),
                pl.BlockSpec((1, Up, Dp), lambda bi, ti, vj: (bi, 0, 0)),
                pl.BlockSpec((Dp, v_tile), lambda bi, ti, vj: (0, vj)),
                pl.BlockSpec((1, v_tile), lambda bi, ti, vj: (0, vj)),
            ],
            out_specs=pl.BlockSpec((1, t_tile, Up, v_tile),
                                   lambda bi, ti, vj: (bi, ti, 0, vj)),
            scratch_shapes=[pltpu.VMEM((t_tile * Up, Dp), jnp.bfloat16)],
        ),
        compiler_params=pltpu.CompilerParams(
            # B and T-tiles parallel (v7x megacore can shard T when B is tiny);
            # V innermost must stay sequential for the scratch reuse.
            dimension_semantics=("parallel", "parallel", "arbitrary"),
            vmem_limit_bytes=vmem_limit),
        cost_estimate=cost,
    )(src, tgt, w_t, b2d)

    out = out_padded[:, :T, :U, :V]
    return out, source_lengths, target_lengths


def _reference(source, target, weight, bias, activation):
    """Pure-JAX reference matching the kernel's compute dtype (bf16 operands
    into the MXU, f32 accumulation, f32 bias add)."""
    joint = source[:, :, None, :] + target[:, None, :, :]
    act = jnp.maximum(joint, 0.0) if activation == "relu" else jnp.tanh(joint)
    out = lax.dot_general(act.astype(jnp.bfloat16),
                          weight.astype(jnp.bfloat16),
                          dimension_numbers=(((3,), (1,)), ((), ())),
                          preferred_element_type=jnp.float32)
    return out + bias


if __name__ == "__main__":
    key = jax.random.PRNGKey(0)
    k1, k2, k3, k4 = jax.random.split(key, 4)

    B, T, U, D, V = 2, 8, 6, 32, 16

    source = jax.random.normal(k1, (B, T, D), dtype=jnp.float32)
    target = jax.random.normal(k2, (B, U, D), dtype=jnp.float32)
    source_lengths = jnp.array([T, T - 2], dtype=jnp.int32)
    target_lengths = jnp.array([U, U - 1], dtype=jnp.int32)

    # Deterministic "Linear(D, V)" parameters (PyTorch weight layout: (V, D)).
    weight = (jax.random.uniform(k3, (V, D), dtype=jnp.float32) - 0.5) * 0.2
    bias = (jax.random.uniform(k4, (V,), dtype=jnp.float32) - 0.5) * 0.2

    # --- relu activation, default bf16 output ---
    out, src_len, tgt_len = joiner_forward(
        source, source_lengths, target, target_lengths, weight, bias,
        activation="relu")
    out = jax.block_until_ready(out)
    assert out.shape == (B, T, U, V) and out.dtype == jnp.bfloat16
    ref = _reference(source, target, weight, bias, "relu")
    assert jnp.allclose(out.astype(jnp.float32), ref, atol=2e-2, rtol=2e-2), \
        float(jnp.max(jnp.abs(out.astype(jnp.float32) - ref)))
    assert jnp.array_equal(src_len, source_lengths)
    assert jnp.array_equal(tgt_len, target_lengths)

    # --- tanh activation, f32 output ---
    out_t, _, _ = joiner_forward(
        source, source_lengths, target, target_lengths, weight, bias,
        activation="tanh", out_dtype=jnp.float32)
    out_t = jax.block_until_ready(out_t)
    assert out_t.shape == (B, T, U, V) and out_t.dtype == jnp.float32
    ref_t = _reference(source, target, weight, bias, "tanh")
    assert jnp.allclose(out_t, ref_t, atol=1e-2, rtol=1e-2), \
        float(jnp.max(jnp.abs(out_t - ref_t)))

    print("KERNEL_OK")
</pallas_src>

<mosaic_0001>
module attributes {stable_mosaic.version = 11 : i64} {
  func.func @_joiner_kernel(%arg0: i32, %arg1: i32, %arg2: i32, %arg3: memref<1x8x128xf32, #tpu.memory_space<vmem>>, %arg4: memref<1x16x128xf32, #tpu.memory_space<vmem>>, %arg5: memref<128x128xbf16, #tpu.memory_space<vmem>>, %arg6: memref<1x128xf32, #tpu.memory_space<vmem>>, %arg7: memref<1x8x16x128xbf16, #tpu.memory_space<vmem>>, %arg8: memref<128x128xbf16, #tpu.memory_space<vmem>>) attributes {dimension_semantics = [#tpu.dimension_semantics<parallel>, #tpu.dimension_semantics<parallel>, #tpu.dimension_semantics<arbitrary>], iteration_bounds = array<i64: 2, 1, 1>, scalar_prefetch = 0 : i64, scratch_operands = 1 : i64, tpu.core_type = #tpu.core_type<tc>, window_params = [{transform_indices = @transform_0, window_bounds = array<i64: 1, 8, 128>}, {transform_indices = @transform_1, window_bounds = array<i64: 1, 16, 128>}, {transform_indices = @transform_2, window_bounds = array<i64: 128, 128>}, {transform_indices = @transform_3, window_bounds = array<i64: 1, 128>}, {transform_indices = @transform_4, window_bounds = array<i64: 1, 8, 16, 128>}]} {
    %c0_i32 = arith.constant 0 : i32
    %0 = arith.cmpi eq, %arg2, %c0_i32 : i32
    %1 = arith.extui %0 : i1 to i32
    %c0_i32_0 = arith.constant 0 : i32
    %2 = arith.cmpi ne, %1, %c0_i32_0 : i32
    scf.if %2 {
      %c0_10 = arith.constant 0 : index
      %c0_11 = arith.constant 0 : index
      %c0_12 = arith.constant 0 : index
      %14 = vector.load %arg3[%c0_10, %c0_11, %c0_12] : memref<1x8x128xf32, #tpu.memory_space<vmem>>, vector<1x8x128xf32>
      %15 = vector.shape_cast %14 : vector<1x8x128xf32> to vector<8x128xf32>
      %c0_13 = arith.constant 0 : index
      %c0_14 = arith.constant 0 : index
      %c0_15 = arith.constant 0 : index
      %16 = vector.load %arg4[%c0_13, %c0_14, %c0_15] : memref<1x16x128xf32, #tpu.memory_space<vmem>>, vector<1x16x128xf32>
      %17 = vector.shape_cast %16 : vector<1x16x128xf32> to vector<16x128xf32>
      %18 = vector.shape_cast %15 : vector<8x128xf32> to vector<8x1x128xf32>
      %19 = vector.shape_cast %17 : vector<16x128xf32> to vector<1x16x128xf32>
      %20 = vector.broadcast %18 : vector<8x1x128xf32> to vector<8x16x128xf32>
      %21 = vector.broadcast %19 : vector<1x16x128xf32> to vector<8x16x128xf32>
      %22 = arith.addf %20, %21 : vector<8x16x128xf32>
      %cst_16 = arith.constant 0.000000e+00 : f32
      %23 = vector.broadcast %cst_16 : f32 to vector<8x16x128xf32>
      %24 = arith.maximumf %22, %23 : vector<8x16x128xf32>
      %25 = vector.shape_cast %24 : vector<8x16x128xf32> to vector<128x128xf32>
      %26 = arith.truncf %25 : vector<128x128xf32> to vector<128x128xbf16>
      %c0_17 = arith.constant 0 : index
      %c0_18 = arith.constant 0 : index
      %27 = vector.load %arg8[%c0_17, %c0_18] : memref<128x128xbf16, #tpu.memory_space<vmem>>, vector<128x128xbf16>
      tpu.vector_store %arg8[%c0_17, %c0_18], %26 {strides = array<i32>} : memref<128x128xbf16, #tpu.memory_space<vmem>>, vector<128x128xbf16>,
    } else {
    }
    %c0 = arith.constant 0 : index
    %c0_1 = arith.constant 0 : index
    %3 = vector.load %arg8[%c0, %c0_1] : memref<128x128xbf16, #tpu.memory_space<vmem>>, vector<128x128xbf16>
    %c0_2 = arith.constant 0 : index
    %c0_3 = arith.constant 0 : index
    %4 = vector.load %arg5[%c0_2, %c0_3] : memref<128x128xbf16, #tpu.memory_space<vmem>>, vector<128x128xbf16>
    %cst = arith.constant dense<0.000000e+00> : vector<128x128xf32>
    %5 = tpu.matmul %3, %4, %cst {dimension_numbers = #tpu.dot_dimension_numbers<[1], [0], [0], [1], [0, 0, 1, 1], [], []>} : vector<128x128xbf16>, vector<128x128xbf16>, vector<128x128xf32> -> vector<128x128xf32>
    %c0_4 = arith.constant 0 : index
    %c0_5 = arith.constant 0 : index
    %6 = vector.load %arg6[%c0_4, %c0_5] : memref<1x128xf32, #tpu.memory_space<vmem>>, vector<1x128xf32>
    %7 = vector.broadcast %6 : vector<1x128xf32> to vector<128x128xf32>
    %8 = arith.addf %5, %7 : vector<128x128xf32>
    %9 = vector.shape_cast %8 : vector<128x128xf32> to vector<8x16x128xf32>
    %10 = arith.truncf %9 : vector<8x16x128xf32> to vector<8x16x128xbf16>
    %c0_6 = arith.constant 0 : index
    %c0_7 = arith.constant 0 : index
    %c0_8 = arith.constant 0 : index
    %c0_9 = arith.constant 0 : index
    %11 = vector.load %arg7[%c0_6, %c0_7, %c0_8, %c0_9] : memref<1x8x16x128xbf16, #tpu.memory_space<vmem>>, vector<1x8x16x128xbf16>
    %12 = vector.shape_cast %11 : vector<1x8x16x128xbf16> to vector<8x16x128xbf16>
    %13 = vector.shape_cast %10 : vector<8x16x128xbf16> to vector<1x8x16x128xbf16>
    tpu.vector_store %arg7[%c0_6, %c0_7, %c0_8, %c0_9], %13 {strides = array<i32>} : memref<1x8x16x128xbf16, #tpu.memory_space<vmem>>, vector<1x8x16x128xbf16>,
    return
  }
  func.func @transform_0(%arg0: i32, %arg1: i32, %arg2: i32) -> (i32, i32, i32) {
    %c0_i32 = arith.constant 0 : i32
    %c0_i32_0 = arith.constant 0 : i32
    return %arg0, %arg1, %c0_i32 : i32, i32, i32
  }
  func.func @transform_1(%arg0: i32, %arg1: i32, %arg2: i32) -> (i32, i32, i32) {
    %c0_i32 = arith.constant 0 : i32
    %c0_i32_0 = arith.constant 0 : i32
    %c0_i32_1 = arith.constant 0 : i32
    return %arg0, %c0_i32, %c0_i32_0 : i32, i32, i32
  }
  func.func @transform_2(%arg0: i32, %arg1: i32, %arg2: i32) -> (i32, i32) {
    %c0_i32 = arith.constant 0 : i32
    %c0_i32_0 = arith.constant 0 : i32
    return %c0_i32, %arg2 : i32, i32
  }
  func.func @transform_3(%arg0: i32, %arg1: i32, %arg2: i32) -> (i32, i32) {
    %c0_i32 = arith.constant 0 : i32
    %c0_i32_0 = arith.constant 0 : i32
    return %c0_i32, %arg2 : i32, i32
  }
  func.func @transform_4(%arg0: i32, %arg1: i32, %arg2: i32) -> (i32, i32, i32, i32) {
    %c0_i32 = arith.constant 0 : i32
    %c0_i32_0 = arith.constant 0 : i32
    return %arg0, %arg1, %c0_i32, %arg2 : i32, i32, i32, i32
  }
}

</mosaic_0001>

<llo_original>
// kernel: joiner_forward.1
$region0: #{joiner_forward.1}
  #allocation0 [shape = 'u32[]', space=smem, size = 0x4, offset = 0x4, fixed_abs, tag = 'smem constant byte address 0x4 - core index']
  #allocation1 [shape = 'u32[144,128]{1,0:T(1,128)}', space=vmem, size = 0x12000, scoped, tag = 'internal scratch']
  #allocation2 [shape = 'bf16[128,128]{1,0:T(8,128)(2,1)}', space=vmem, size = 0x8000, scoped, tag = 'scratch operand']
  %s0 = inlined_call_operand.vmem [shape: f32[2,8,128], index: 0, kind: input, shape index: {}]
  %s1 = inlined_call_operand.vmem [shape: f32[2,16,128], index: 1, kind: input, shape index: {}]
  %s2 = inlined_call_operand.vmem [shape: bf16[128,128], index: 2, kind: input, shape index: {}]
  %s3 = inlined_call_operand.vmem [shape: f32[1,128], index: 3, kind: input, shape index: {}]
  %s4 = inlined_call_operand.vmem [shape: bf16[2,8,16,128], index: 4, kind: output, shape index: {}]
  %s5 = sld [smem:[#allocation0]]
  $region53: #{joiner_forward.1} parent=0
    _
  %s7 = ssub.s32 1, %s5
  %s8 = scalar_select 0, %s7, %s5
  loop: start=0, step=1, limit=4
  $region2: #{joiner_forward.1} parent=0 // loop_pre_header
    _
  $region3: #{joiner_forward.1} parent=0 // loop_header
    %s10 = sphi 0, %s14
    %p11 = scmp.ge.s32.totalorder %s10, 4
    %s17 = sphi 0, %s36
    %s18 = sphi 0, %s32
    %s19 = sphi 0, %s28
    %s20 = sphi 0, %s17
    %s21 = sphi 0, %s18
    %s22 = sphi 0, %s19
    %s23 = sphi 0, %s20
    %s24 = sphi 0, %s21
    %s25 = sphi 0, %s22
    %s41 = sphi 0, %s43
    %s44 = sphi 0, %s41
    %s45 = sphi 0, %s44
    %s61 = sphi 0, %s45
    %s67 = sphi 0, %s69
    %s70 = sphi 0, %s67
    %s71 = sphi 0, %s70
    %s87 = sphi 0, %s71
    %s93 = sphi 0, %s95
    %s96 = sphi 0, %s93
    %s97 = sphi 0, %s96
    %s113 = sphi 0, %s97
    %s119 = sphi 0, %s121
    %s122 = sphi 0, %s119
    %s123 = sphi 0, %s122
    %s139 = sphi 0, %s123
    %s149 = sphi 0, %s151
    %s152 = sphi 0, %s149
    %s153 = sphi 0, %s152
    %s169 = sphi 0, %s153
  $region4: #{joiner_forward.1} parent=0 // loop_header_branch
    %13 = sbr.rel (%p11) target = $region8
  $region5: #{joiner_forward.1} parent=0 // loop_body
    %s15 = ssub.s32 %s10, 1
    %s16 = ssub.s32 %s10, 2
    %s26 = sadd.s32 1, %s19
    %p27 = scmp.ge.s32.totalorder %s26, 1
    %s28 = scalar_select %p27, 0, %s26
    %s29 = sadd.s32 1, %s18
    %s30 = scalar_select %p27, %s29, %s18
    %p31 = scmp.ge.s32.totalorder %s30, 1
    %s32 = scalar_select %p31, 0, %s30
    %s33 = sadd.s32 1, %s17
    %s34 = scalar_select %p31, %s33, %s17
    %p35 = scmp.ge.s32.totalorder %s34, 2
    %s36 = scalar_select %p35, 0, %s34
    %s37 = ssub.s32 %s17, %s36
    %s38 = ssub.s32 %s18, %s32
    %s39 = sor.u32 %s37, %s38
    %p40 = scmp.eq.s32.totalorder %s39, 0
    %s42 = sadd.s32 %s41, 1
    %s43 = scalar_select %p40, %s41, %s42
    %p46 = pneg %p40
    %p47 = scmp.eq.s32.totalorder %s10, 1
    %p48 = por %p46, %p47
    %p49 = scmp.ne.s32.totalorder %s41, %s44
    %p50 = scmp.eq.s32.totalorder %s10, 0
    %p51 = por %p49, %p50
    %p52 = scmp.ne.s32.totalorder %s41, %s44
    %p53 = scmp.eq.s32.totalorder %s15, 1
    %p54 = por %p52, %p53
    %p55 = scmp.ne.s32.totalorder %s44, %s45
    %p56 = scmp.eq.s32.totalorder %s15, 0
    %p57 = por %p55, %p56
    %p58 = scmp.ne.s32.totalorder %s44, %s45
    %p59 = scmp.eq.s32.totalorder %s16, 1
    %p60 = por %p58, %p59
    %p62 = scmp.ne.s32.totalorder %s45, %s61
    %p63 = scmp.eq.s32.totalorder %s16, 0
    %p64 = por %p62, %p63
    %s65 = ssub.s32 %s17, %s36
    %p66 = scmp.eq.s32.totalorder %s65, 0
    %s68 = sadd.s32 %s67, 1
    %s69 = scalar_select %p66, %s67, %s68
    %p72 = pneg %p66
    %p73 = scmp.eq.s32.totalorder %s10, 1
    %p74 = por %p72, %p73
    %p75 = scmp.ne.s32.totalorder %s67, %s70
    %p76 = scmp.eq.s32.totalorder %s10, 0
    %p77 = por %p75, %p76
    %p78 = scmp.ne.s32.totalorder %s67, %s70
    %p79 = scmp.eq.s32.totalorder %s15, 1
    %p80 = por %p78, %p79
    %p81 = scmp.ne.s32.totalorder %s70, %s71
    %p82 = scmp.eq.s32.totalorder %s15, 0
    %p83 = por %p81, %p82
    %p84 = scmp.ne.s32.totalorder %s70, %s71
    %p85 = scmp.eq.s32.totalorder %s16, 1
    %p86 = por %p84, %p85
    %p88 = scmp.ne.s32.totalorder %s71, %s87
    %p89 = scmp.eq.s32.totalorder %s16, 0
    %p90 = por %p88, %p89
    %s91 = ssub.s32 %s19, %s28
    %p92 = scmp.eq.s32.totalorder %s91, 0
    %s94 = sadd.s32 %s93, 1
    %s95 = scalar_select %p92, %s93, %s94
    %p98 = pneg %p92
    %p99 = scmp.eq.s32.totalorder %s10, 1
    %p100 = por %p98, %p99
    %p101 = scmp.ne.s32.totalorder %s93, %s96
    %p102 = scmp.eq.s32.totalorder %s10, 0
    %p103 = por %p101, %p102
    %p104 = scmp.ne.s32.totalorder %s93, %s96
    %p105 = scmp.eq.s32.totalorder %s15, 1
    %p106 = por %p104, %p105
    %p107 = scmp.ne.s32.totalorder %s96, %s97
    %p108 = scmp.eq.s32.totalorder %s15, 0
    %p109 = por %p107, %p108
    %p110 = scmp.ne.s32.totalorder %s96, %s97
    %p111 = scmp.eq.s32.totalorder %s16, 1
    %p112 = por %p110, %p111
    %p114 = scmp.ne.s32.totalorder %s97, %s113
    %p115 = scmp.eq.s32.totalorder %s16, 0
    %p116 = por %p114, %p115
    %s117 = ssub.s32 %s19, %s28
    %p118 = scmp.eq.s32.totalorder %s117, 0
    %s120 = sadd.s32 %s119, 1
    %s121 = scalar_select %p118, %s119, %s120
    %p124 = pneg %p118
    %p125 = scmp.eq.s32.totalorder %s10, 1
    %p126 = por %p124, %p125
    %p127 = scmp.ne.s32.totalorder %s119, %s122
    %p128 = scmp.eq.s32.totalorder %s10, 0
    %p129 = por %p127, %p128
    %p130 = scmp.ne.s32.totalorder %s119, %s122
    %p131 = scmp.eq.s32.totalorder %s15, 1
    %p132 = por %p130, %p131
    %p133 = scmp.ne.s32.totalorder %s122, %s123
    %p134 = scmp.eq.s32.totalorder %s15, 0
    %p135 = por %p133, %p134
    %p136 = scmp.ne.s32.totalorder %s122, %s123
    %p137 = scmp.eq.s32.totalorder %s16, 1
    %p138 = por %p136, %p137
    %p140 = scmp.ne.s32.totalorder %s123, %s139
    %p141 = scmp.eq.s32.totalorder %s16, 0
    %p142 = por %p140, %p141
    %s143 = ssub.s32 %s17, %s36
    %s144 = ssub.s32 %s18, %s32
    %s145 = sor.u32 %s143, %s144
    %s146 = ssub.s32 %s19, %s28
    %s147 = sor.u32 %s145, %s146
    %p148 = scmp.eq.s32.totalorder %s147, 0
    %s150 = sadd.s32 %s149, 1
    %s151 = scalar_select %p148, %s149, %s150
    %p154 = pneg %p148
    %p155 = scmp.eq.s32.totalorder %s10, 1
    %p156 = por %p154, %p155
    %p157 = scmp.ne.s32.totalorder %s149, %s152
    %p158 = scmp.eq.s32.totalorder %s10, 0
    %p159 = por %p157, %p158
    %p160 = scmp.ne.s32.totalorder %s149, %s152
    %p161 = scmp.eq.s32.totalorder %s15, 1
    %p162 = por %p160, %p161
    %p163 = scmp.ne.s32.totalorder %s152, %s153
    %p164 = scmp.eq.s32.totalorder %s15, 0
    %p165 = por %p163, %p164
    %p166 = scmp.ne.s32.totalorder %s152, %s153
    %p167 = scmp.eq.s32.totalorder %s16, 1
    %p168 = por %p166, %p167
    %p170 = scmp.ne.s32.totalorder %s153, %s169
    %p171 = scmp.eq.s32.totalorder %s16, 0
    %p172 = por %p170, %p171
    %p173 = scmp.le.s32.totalorder 1, %s10
    %p174 = scmp.lt.s32.totalorder %s10, 3
    %p175 = pnand %p173, %p174
    %p176 = pneg %p175
    // Predicated region
    $region9: #{joiner_forward.1} parent=5 // pred_check
      _
    $region10: #{joiner_forward.1} parent=5 // pred_check_branch
      %178 = sbr.rel (%p175) target = $region12
    $region11: #{joiner_forward.1} parent=5 // pred_region
      %s179 = ssub.s32 %s10, 1
      // Predicated region
      $region13: #{joiner_forward.1} parent=11 // pred_check
        %p180 = pneg %p109
      $region14: #{joiner_forward.1} parent=11 // pred_check_branch
        %182 = sbr.rel (%p180) target = $region16
      $region15: #{joiner_forward.1} parent=11 // pred_region
        %p183 = scmp.lt.s32.totalorder %s22, 0
        %s184 = scalar_select %p183, %s22, 0
        %s185 = smul.addr %s184, 4
        %s186 = scalar_lea.vmem %s2, %s185
      $region16: #{joiner_forward.1} parent=11 // pred_fallthru
        _
      // Predicated region
      $region17: #{joiner_forward.1} parent=11 // pred_check
        %p187 = pneg %p135
      $region18: #{joiner_forward.1} parent=11 // pred_check_branch
        %189 = sbr.rel (%p187) target = $region20
      $region19: #{joiner_forward.1} parent=11 // pred_region
        %p190 = scmp.lt.s32.totalorder %s22, 0
        %s191 = scalar_select %p190, %s22, 0
        %s192 = scalar_lea.vmem %s3, %s191
      $region20: #{joiner_forward.1} parent=11 // pred_fallthru
        _
    $region12: #{joiner_forward.1} parent=5 // pred_fallthru
      _
    %p193 = scmp.lt.s32.totalorder %s10, 2
    // Predicated region
    $region21: #{joiner_forward.1} parent=5 // pred_check
      %p194 = pneg %p193
    $region22: #{joiner_forward.1} parent=5 // pred_check_branch
      %196 = sbr.rel (%p194) target = $region24
    $region23: #{joiner_forward.1} parent=5 // pred_region
      // Predicated region
      $region25: #{joiner_forward.1} parent=23 // pred_check
        %p197 = pneg %p51
      $region26: #{joiner_forward.1} parent=23 // pred_check_branch
        %199 = sbr.rel (%p197) target = $region28
      $region27: #{joiner_forward.1} parent=23 // pred_region
        %p200 = scmp.lt.s32.totalorder %s17, 1
        %s201 = scalar_select %p200, %s17, 1
        %p202 = scmp.lt.s32.totalorder %s18, 0
        %s203 = scalar_select %p202, %s18, 0
        %s204 = sadd.s32 %s203, %s201
        %s205 = smul.addr %s204, 8
        %s206 = scalar_lea.vmem %s0, %s205
      $region28: #{joiner_forward.1} parent=23 // pred_fallthru
        _
      // Predicated region
      $region29: #{joiner_forward.1} parent=23 // pred_check
        %p207 = pneg %p77
      $region30: #{joiner_forward.1} parent=23 // pred_check_branch
        %209 = sbr.rel (%p207) target = $region32
      $region31: #{joiner_forward.1} parent=23 // pred_region
        %p210 = scmp.lt.s32.totalorder %s17, 1
        %s211 = scalar_select %p210, %s17, 1
        %s212 = smul.addr %s211, 2
        %s213 = smul.addr %s212, 8
        %s214 = scalar_lea.vmem %s1, %s213
      $region32: #{joiner_forward.1} parent=23 // pred_fallthru
        _
    $region24: #{joiner_forward.1} parent=5 // pred_fallthru
      _
    %p215 = scmp.le.s32.totalorder 1, %s10
    %p216 = scmp.lt.s32.totalorder %s10, 3
    %p217 = pnand %p215, %p216
    %p218 = pneg %p217
    // Predicated region
    $region33: #{joiner_forward.1} parent=5 // pred_check
      _
    $region34: #{joiner_forward.1} parent=5 // pred_check_branch
      %220 = sbr.rel (%p217) target = $region36
    $region35: #{joiner_forward.1} parent=5 // pred_region
      %s221 = ssub.s32 %s10, 1
      %p222 = scmp.lt.s32.totalorder %s20, 1
      %s223 = scalar_select %p222, %s20, 1
      %p224 = scmp.lt.s32.totalorder %s21, 0
      %s225 = scalar_select %p224, %s21, 0
      %s226 = sadd.s32 %s225, %s223
      %s227 = smul.addr %s226, 8
      %s228 = scalar_lea.vmem %s0, %s227
      %p229 = pneg %p57
      %p230 = pneg %p54
      %p231 = scmp.lt.s32.totalorder %s20, 1
      %s232 = scalar_select %p231, %s20, 1
      %s233 = smul.addr %s232, 2
      %s234 = smul.addr %s233, 8
      %s235 = scalar_lea.vmem %s1, %s234
      %p236 = pneg %p83
      %p237 = pneg %p80
      %p238 = scmp.lt.s32.totalorder %s22, 0
      %s239 = scalar_select %p238, %s22, 0
      %s240 = smul.addr %s239, 4
      %s241 = scalar_lea.vmem %s2, %s240
      %p242 = pneg %p109
      %p243 = pneg %p106
      %p244 = scmp.lt.s32.totalorder %s22, 0
      %s245 = scalar_select %p244, %s22, 0
      %s246 = scalar_lea.vmem %s3, %s245
      %p247 = pneg %p135
      %p248 = pneg %p132
      %p249 = pneg %p165
      %p250 = pneg %p162
      %s251 = smul.u32 8, %s21
      %p252 = scmp.lt.s32.totalorder %s20, 1
      %s253 = scalar_select %p252, %s20, 1
      %p254 = scmp.lt.s32.totalorder %s251, 7
      %s255 = scalar_select %p254, %s251, 7
      %p256 = scmp.lt.s32.totalorder %s22, 0
      %s257 = scalar_select %p256, %s22, 0
      %s258 = smul.addr %s255, 2
      %s259 = sadd.s32 %s257, %s258
      %s260 = smul.addr %s253, 16
      %s261 = sadd.s32 %s259, %s260
      %s262 = smul.addr %s261, 4
      %s263 = scalar_lea.vmem %s4, %s262
      %p264 = scmp.lt.s32.totalorder %s20, 1
      %s265 = scalar_select %p264, %s20, 1
      %p266 = scmp.lt.s32.totalorder %s21, 0
      %s267 = scalar_select %p266, %s21, 0
      %s268 = sadd.s32 %s267, %s265
      %s269 = smul.addr %s268, 8
      %s270 = scalar_lea.vmem %s0, %s269
      %p271 = scmp.lt.s32.totalorder %s20, 1
      %s272 = scalar_select %p271, %s20, 1
      %s273 = smul.addr %s272, 2
      %s274 = smul.addr %s273, 8
      %s275 = scalar_lea.vmem %s1, %s274
      %p276 = scmp.lt.s32.totalorder %s22, 0
      %s277 = scalar_select %p276, %s22, 0
      %s278 = smul.addr %s277, 4
      %s279 = scalar_lea.vmem %s2, %s278
      %p280 = scmp.lt.s32.totalorder %s22, 0
      %s281 = scalar_select %p280, %s22, 0
      %s282 = scalar_lea.vmem %s3, %s281
      %s283 = smul.u32 8, %s21
      %p284 = scmp.lt.s32.totalorder %s20, 1
      %s285 = scalar_select %p284, %s20, 1
      %p286 = scmp.lt.s32.totalorder %s283, 7
      %s287 = scalar_select %p286, %s283, 7
      %p288 = scmp.lt.s32.totalorder %s22, 0
      %s289 = scalar_select %p288, %s22, 0
      %s290 = smul.addr %s287, 2
      %s291 = sadd.s32 %s289, %s290
      %s292 = smul.addr %s285, 16
      %s293 = sadd.s32 %s291, %s292
      %s294 = smul.addr %s293, 4
      %s295 = scalar_lea.vmem %s4, %s294
      %s296 = smul.u32 8, %s21
      %p298 = scmp.eq.s32.totalorder %s22, 0
      // Predicated region
      $region37: #{joiner_forward.1} parent=35 // pred_check
        %p299 = pneg %p298
      $region38: #{joiner_forward.1} parent=35 // pred_check_branch
        %301 = sbr.rel (%p299) target = $region40
      $region39: #{joiner_forward.1} parent=35 // pred_region
        %v302 = vld [vmem:[%s270] sm:$0xff]
        %v303 = vld [vmem:[%s275] sm:$0xff]
        %v304 = vld [vmem:[%s275 + $0x8] sm:$0xff]
        %v306 = vcombine.high %v302, %v302
        %v308 = vunpack.c.l.s4 1966171168
        %v309 = vunpack.c.0.s8 %v308
        %v310 = vlaneseq
        %v311 = vshrl.u32 %v310, 7
        %v312 = vsub.s32 %v309, %v311
        %v313 = vrot.slane %v302, %v312
        %v315 = vunpack.c.l.s4 1966171168
        %v316 = vunpack.c.0.s8 %v315
        %v317 = vlaneseq
        %v318 = vshrl.u32 %v317, 7
        %v319 = vsub.s32 %v316, %v318
        %v320 = vrot.slane %v306, %v319
        %v321 = vcombine.high %v313, %v313
        %v322 = vcombine.high %v320, %v320
        %v324 = vunpack.c.l.s4 1966171168
        %v325 = vunpack.c.0.s8 %v324
        %v326 = vlaneseq
        %v327 = vshrl.u32 %v326, 7
        %v328 = vsub.s32 %v325, %v327
        %v329 = vrot.slane %v313, %v328
        %v331 = vunpack.c.l.s4 1966171168
        %v332 = vunpack.c.0.s8 %v331
        %v333 = vlaneseq
        %v334 = vshrl.u32 %v333, 7
        %v335 = vsub.s32 %v332, %v334
        %v336 = vrot.slane %v320, %v335
        %v338 = vunpack.c.l.s4 1966171168
        %v339 = vunpack.c.0.s8 %v338
        %v340 = vlaneseq
        %v341 = vshrl.u32 %v340, 7
        %v342 = vsub.s32 %v339, %v341
        %v343 = vrot.slane %v321, %v342
        %v345 = vunpack.c.l.s4 1966171168
        %v346 = vunpack.c.0.s8 %v345
        %v347 = vlaneseq
        %v348 = vshrl.u32 %v347, 7
        %v349 = vsub.s32 %v346, %v348
        %v350 = vrot.slane %v322, %v349
        %v351 = vcombine.high %v329, %v329
        %v352 = vcombine.high %v336, %v336
        %v353 = vcombine.high %v343, %v343
        %v354 = vcombine.high %v350, %v350
        %v355 = vlaneseq
        %v356 = vshrl.u32 %v355, 7
        %v357 = vsub.s32 0, %v356
        %v358 = vrot.slane %v329, %v357
        %v359 = vlaneseq
        %v360 = vshrl.u32 %v359, 7
        %v361 = vsub.s32 0, %v360
        %v362 = vrot.slane %v343, %v361
        %v363 = vlaneseq
        %v364 = vshrl.u32 %v363, 7
        %v365 = vsub.s32 0, %v364
        %v366 = vrot.slane %v351, %v365
        %v367 = vlaneseq
        %v368 = vshrl.u32 %v367, 7
        %v369 = vsub.s32 0, %v368
        %v370 = vrot.slane %v353, %v369
        %v371 = vlaneseq
        %v372 = vshrl.u32 %v371, 7
        %v373 = vsub.s32 0, %v372
        %v374 = vrot.slane %v336, %v373
        %v375 = vlaneseq
        %v376 = vshrl.u32 %v375, 7
        %v377 = vsub.s32 0, %v376
        %v378 = vrot.slane %v350, %v377
        %v379 = vlaneseq
        %v380 = vshrl.u32 %v379, 7
        %v381 = vsub.s32 0, %v380
        %v382 = vrot.slane %v352, %v381
        %v383 = vlaneseq
        %v384 = vshrl.u32 %v383, 7
        %v385 = vsub.s32 0, %v384
        %v386 = vrot.slane %v354, %v385
        %v395 = vadd.f32 %v358, %v303
        %v396 = vadd.f32 %v358, %v304
        %v397 = vadd.f32 %v362, %v303
        %v398 = vadd.f32 %v362, %v304
        %v399 = vadd.f32 %v366, %v303
        %v400 = vadd.f32 %v366, %v304
        %v401 = vadd.f32 %v370, %v303
        %v402 = vadd.f32 %v370, %v304
        %v403 = vadd.f32 %v374, %v303
        %v404 = vadd.f32 %v374, %v304
        %v405 = vadd.f32 %v378, %v303
        %v406 = vadd.f32 %v378, %v304
        %v407 = vadd.f32 %v382, %v303
        %v408 = vadd.f32 %v382, %v304
        %v409 = vadd.f32 %v386, %v303
        %v410 = vadd.f32 %v386, %v304
        %v411 = vmax.f32 %v395, 0.0
        %v412 = vmax.f32 %v396, 0.0
        %v413 = vmax.f32 %v397, 0.0
        %v414 = vmax.f32 %v398, 0.0
        %v415 = vmax.f32 %v399, 0.0
        %v416 = vmax.f32 %v400, 0.0
        %v417 = vmax.f32 %v401, 0.0
        %v418 = vmax.f32 %v402, 0.0
        %v419 = vmax.f32 %v403, 0.0
        %v420 = vmax.f32 %v404, 0.0
        %v421 = vmax.f32 %v405, 0.0
        %v422 = vmax.f32 %v406, 0.0
        %v423 = vmax.f32 %v407, 0.0
        %v424 = vmax.f32 %v408, 0.0
        %v425 = vmax.f32 %v409, 0.0
        %v426 = vmax.f32 %v410, 0.0
        %v427 = vpack.c.bf16 %v412, %v411
        %v428 = vpack.c.bf16 %v414, %v413
        %v429 = vpack.c.bf16 %v416, %v415
        %v430 = vpack.c.bf16 %v418, %v417
        %v431 = vpack.c.bf16 %v420, %v419
        %v432 = vpack.c.bf16 %v422, %v421
        %v433 = vpack.c.bf16 %v424, %v423
        %v434 = vpack.c.bf16 %v426, %v425
        %v443 = vunpack.c.l.b16 %v427
        %v444 = vunpack.c.h.b16 %v427
        %v445 = vunpack.c.l.b16 %v428
        %v446 = vunpack.c.h.b16 %v428
        %v447 = vunpack.c.l.b16 %v429
        %v448 = vunpack.c.h.b16 %v429
        %v449 = vunpack.c.l.b16 %v430
        %v450 = vunpack.c.h.b16 %v430
        %v451 = vunpack.c.l.b16 %v431
        %v452 = vunpack.c.h.b16 %v431
        %v453 = vunpack.c.l.b16 %v432
        %v454 = vunpack.c.h.b16 %v432
        %v455 = vunpack.c.l.b16 %v433
        %v456 = vunpack.c.h.b16 %v433
        %v457 = vunpack.c.l.b16 %v434
        %v458 = vunpack.c.h.b16 %v434
        %v459 = vpack.c.b16 %v443, %v443
        %v460 = vpack.c.b16 %v444, %v444
        %v461 = vpack.c.b16 %v445, %v445
        %v462 = vpack.c.b16 %v446, %v446
        %v463 = vpack.c.b16 %v447, %v447
        %v464 = vpack.c.b16 %v448, %v448
        %v465 = vpack.c.b16 %v449, %v449
        %v466 = vpack.c.b16 %v450, %v450
        %v467 = vpack.c.b16 %v451, %v451
        %v468 = vpack.c.b16 %v452, %v452
        %v469 = vpack.c.b16 %v453, %v453
        %v470 = vpack.c.b16 %v454, %v454
        %v471 = vpack.c.b16 %v455, %v455
        %v472 = vpack.c.b16 %v456, %v456
        %v473 = vpack.c.b16 %v457, %v457
        %v474 = vpack.c.b16 %v458, %v458
        %491 = vst [vmem:[#allocation2] sm:$0xf] %v459
        %492 = vst [vmem:[#allocation2 + $0x4] sm:$0xf] %v460
        %493 = vst [vmem:[#allocation2 + $0x8] sm:$0xf] %v461
        %494 = vst [vmem:[#allocation2 + $0xc] sm:$0xf] %v462
        %495 = vst [vmem:[#allocation2 + $0x10] sm:$0xf] %v463
        %496 = vst [vmem:[#allocation2 + $0x14] sm:$0xf] %v464
        %497 = vst [vmem:[#allocation2 + $0x18] sm:$0xf] %v465
        %498 = vst [vmem:[#allocation2 + $0x1c] sm:$0xf] %v466
        %499 = vst [vmem:[#allocation2 + $0x20] sm:$0xf] %v467
        %500 = vst [vmem:[#allocation2 + $0x24] sm:$0xf] %v468
        %501 = vst [vmem:[#allocation2 + $0x28] sm:$0xf] %v469
        %502 = vst [vmem:[#allocation2 + $0x2c] sm:$0xf] %v470
        %503 = vst [vmem:[#allocation2 + $0x30] sm:$0xf] %v471
        %504 = vst [vmem:[#allocation2 + $0x34] sm:$0xf] %v472
        %505 = vst [vmem:[#allocation2 + $0x38] sm:$0xf] %v473
        %506 = vst [vmem:[#allocation2 + $0x3c] sm:$0xf] %v474
      $region40: #{joiner_forward.1} parent=35 // pred_fallthru
        _
      %v507 = vld [vmem:[#allocation2] sm:$0xf]
      %v508 = vld [vmem:[#allocation2 + $0x4] sm:$0xf]
      %v509 = vld [vmem:[#allocation2 + $0x8] sm:$0xf]
      %v510 = vld [vmem:[#allocation2 + $0xc] sm:$0xf]
      %v511 = vld [vmem:[#allocation2 + $0x10] sm:$0xf]
      %v512 = vld [vmem:[#allocation2 + $0x14] sm:$0xf]
      %v513 = vld [vmem:[#allocation2 + $0x18] sm:$0xf]
      %v514 = vld [vmem:[#allocation2 + $0x1c] sm:$0xf]
      %v515 = vld [vmem:[#allocation2 + $0x20] sm:$0xf]
      %v516 = vld [vmem:[#allocation2 + $0x24] sm:$0xf]
      %v517 = vld [vmem:[#allocation2 + $0x28] sm:$0xf]
      %v518 = vld [vmem:[#allocation2 + $0x2c] sm:$0xf]
      %v519 = vld [vmem:[#allocation2 + $0x30] sm:$0xf]
      %v520 = vld [vmem:[#allocation2 + $0x34] sm:$0xf]
      %v521 = vld [vmem:[#allocation2 + $0x38] sm:$0xf]
      %v522 = vld [vmem:[#allocation2 + $0x3c] sm:$0xf]
      %v523 = vld [vmem:[%s279] sm:$0xf]
      %v524 = vld [vmem:[%s279 + $0x4] sm:$0xf]
      %v525 = vld [vmem:[%s279 + $0x8] sm:$0xf]
      %v526 = vld [vmem:[%s279 + $0xc] sm:$0xf]
      %v527 = vld [vmem:[%s279 + $0x10] sm:$0xf]
      %v528 = vld [vmem:[%s279 + $0x14] sm:$0xf]
      %v529 = vld [vmem:[%s279 + $0x18] sm:$0xf]
      %v530 = vld [vmem:[%s279 + $0x1c] sm:$0xf]
      %v531 = vld [vmem:[%s279 + $0x20] sm:$0xf]
      %v532 = vld [vmem:[%s279 + $0x24] sm:$0xf]
      %v533 = vld [vmem:[%s279 + $0x28] sm:$0xf]
      %v534 = vld [vmem:[%s279 + $0x2c] sm:$0xf]
      %v535 = vld [vmem:[%s279 + $0x30] sm:$0xf]
      %v536 = vld [vmem:[%s279 + $0x34] sm:$0xf]
      %v537 = vld [vmem:[%s279 + $0x38] sm:$0xf]
      %v538 = vld [vmem:[%s279 + $0x3c] sm:$0xf]
      %v539 = vld [vmem:[%s282] sm:$0x1]
      %v541 = vlaneseq
      %v542 = vshrl.u32 %v541, 7
      %v543 = vsub.s32 0, %v542
      %v544 = vrot.slane %v539, %v543
      %v562 = vunpack.c.l.b16 %v507
      %v563 = vunpack.c.l.b16 %v508
      %v564 = vunpack.c.l.b16 %v509
      %v565 = vunpack.c.l.b16 %v510
      %v566 = vunpack.c.l.b16 %v511
      %v567 = vunpack.c.l.b16 %v512
      %v568 = vunpack.c.l.b16 %v513
      %v569 = vunpack.c.l.b16 %v514
      %v570 = vunpack.c.l.b16 %v515
      %v571 = vunpack.c.l.b16 %v516
      %v572 = vunpack.c.l.b16 %v517
      %v573 = vunpack.c.l.b16 %v518
      %v574 = vunpack.c.l.b16 %v519
      %v575 = vunpack.c.l.b16 %v520
      %v576 = vunpack.c.l.b16 %v521
      %v577 = vunpack.c.l.b16 %v522
      %v578 = vpack.c.b16 %v563, %v562
      %v579 = vpack.c.b16 %v565, %v564
      %v580 = vpack.c.b16 %v567, %v566
      %v581 = vpack.c.b16 %v569, %v568
      %v582 = vpack.c.b16 %v571, %v570
      %v583 = vpack.c.b16 %v573, %v572
      %v584 = vpack.c.b16 %v575, %v574
      %v585 = vpack.c.b16 %v577, %v576
      %v610 = vunpack.c.l.b16 %v523
      %v611 = vunpack.c.l.b16 %v524
      %v612 = vunpack.c.l.b16 %v525
      %v613 = vunpack.c.l.b16 %v526
      %v614 = vunpack.c.l.b16 %v527
      %v615 = vunpack.c.l.b16 %v528
      %v616 = vunpack.c.l.b16 %v529
      %v617 = vunpack.c.l.b16 %v530
      %v618 = vunpack.c.l.b16 %v531
      %v619 = vunpack.c.l.b16 %v532
      %v620 = vunpack.c.l.b16 %v533
      %v621 = vunpack.c.l.b16 %v534
      %v622 = vunpack.c.l.b16 %v535
      %v623 = vunpack.c.l.b16 %v536
      %v624 = vunpack.c.l.b16 %v537
      %v625 = vunpack.c.l.b16 %v538
      %v626 = vpack.c.b16 %v611, %v610
      %v627 = vpack.c.b16 %v613, %v612
      %v628 = vpack.c.b16 %v615, %v614
      %v629 = vpack.c.b16 %v617, %v616
      %v630 = vpack.c.b16 %v619, %v618
      %v631 = vpack.c.b16 %v621, %v620
      %v632 = vpack.c.b16 %v623, %v622
      %v633 = vpack.c.b16 %v625, %v624
      %642 = vmatprep.subr.bf16.mxu0 0
      %643 = vmatpush1.bf16.msra.mxu0 %v633
      %644 = vmatprep.subr.bf16.mxu0 0
      %645 = vmatpush1.bf16.msra.mxu0 %v632
      %646 = vmatprep.subr.bf16.mxu0 0
      %647 = vmatpush1.bf16.msra.mxu0 %v631
      %648 = vmatprep.subr.bf16.mxu0 0
      %649 = vmatpush1.bf16.msra.mxu0 %v630
      %650 = vmatprep.subr.bf16.mxu0 0
      %651 = vmatpush1.bf16.msra.mxu0 %v629
      %652 = vmatprep.subr.bf16.mxu0 0
      %653 = vmatpush1.bf16.msra.mxu0 %v628
      %654 = vmatprep.subr.bf16.mxu0 0
      %655 = vmatpush1.bf16.msra.mxu0 %v627
      %656 = vmatprep.subr.bf16.mxu0 0
      %657 = vmatpush1.bf16.msra.mxu0 %v626
      %658 = vmatprep.subr.bf16.mxu0 0
      %659 = vmatpush2.bf16.msra.mxu0 0
      %660 = vmatprep.subr.bf16.mxu0 0
      %661 = vmatpush2.bf16.msra.mxu0 0
      %662 = vmatprep.subr.bf16.mxu0 0
      %663 = vmatpush2.bf16.msra.mxu0 0
      %664 = vmatprep.subr.bf16.mxu0 0
      %665 = vmatpush2.bf16.msra.mxu0 0
      %666 = vmatprep.subr.bf16.mxu0 0
      %667 = vmatpush2.bf16.msra.mxu0 0
      %668 = vmatprep.subr.bf16.mxu0 0
      %669 = vmatpush2.bf16.msra.mxu0 0
      %670 = vmatprep.subr.bf16.mxu0 0
      %671 = vmatpush2.bf16.msra.mxu0 0
      %672 = vmatprep.subr.bf16.mxu0 0
      %673 = vmatpush2.bf16.msra.mxu0 0
      %674 = vmatprep.mubr.bf16.mxu0 0
      %675 = vmatmul.mubr.bf16.gmra.mxu0 %v578
      %v676 = vpop.f32.mrf.mxu0
      %v677 = vadd.f32 %v544, %v676
      %v678 = vpop.f32.mrf.mxu0
      %v679 = vpop.f32.mrf.mxu0
      %v680 = vadd.f32 %v544, %v679
      %v681 = vpop.f32.mrf.mxu0
      %682 = vmatprep.mubr.bf16.mxu0 0
      %683 = vmatmul.mubr.bf16.gmra.mxu0 %v579
      %v684 = vpop.f32.mrf.mxu0
      %v685 = vadd.f32 %v544, %v684
      %v686 = vpop.f32.mrf.mxu0
      %v687 = vpop.f32.mrf.mxu0
      %v688 = vadd.f32 %v544, %v687
      %v689 = vpop.f32.mrf.mxu0
      %690 = vmatprep.mubr.bf16.mxu0 0
      %691 = vmatmul.mubr.bf16.gmra.mxu0 %v580
      %v692 = vpop.f32.mrf.mxu0
      %v693 = vadd.f32 %v544, %v692
      %v694 = vpop.f32.mrf.mxu0
      %v695 = vpop.f32.mrf.mxu0
      %v696 = vadd.f32 %v544, %v695
      %v697 = vpop.f32.mrf.mxu0
      %698 = vmatprep.mubr.bf16.mxu0 0
      %699 = vmatmul.mubr.bf16.gmra.mxu0 %v581
      %v700 = vpop.f32.mrf.mxu0
      %v701 = vadd.f32 %v544, %v700
      %v702 = vpop.f32.mrf.mxu0
      %v703 = vpop.f32.mrf.mxu0
      %v704 = vadd.f32 %v544, %v703
      %v705 = vpop.f32.mrf.mxu0
      %706 = vmatprep.mubr.bf16.mxu0 0
      %707 = vmatmul.mubr.bf16.gmra.mxu0 %v582
      %v708 = vpop.f32.mrf.mxu0
      %v709 = vadd.f32 %v544, %v708
      %v710 = vpop.f32.mrf.mxu0
      %v711 = vpop.f32.mrf.mxu0
      %v712 = vadd.f32 %v544, %v711
      %v713 = vpop.f32.mrf.mxu0
      %714 = vmatprep.mubr.bf16.mxu0 0
      %715 = vmatmul.mubr.bf16.gmra.mxu0 %v583
      %v716 = vpop.f32.mrf.mxu0
      %v717 = vadd.f32 %v544, %v716
      %v718 = vpop.f32.mrf.mxu0
      %v719 = vpop.f32.mrf.mxu0
      %v720 = vadd.f32 %v544, %v719
      %v721 = vpop.f32.mrf.mxu0
      %722 = vmatprep.mubr.bf16.mxu0 0
      %723 = vmatmul.mubr.bf16.gmra.mxu0 %v584
      %v724 = vpop.f32.mrf.mxu0
      %v725 = vadd.f32 %v544, %v724
      %v726 = vpop.f32.mrf.mxu0
      %v727 = vpop.f32.mrf.mxu0
      %v728 = vadd.f32 %v544, %v727
      %v729 = vpop.f32.mrf.mxu0
      %730 = vmatprep.mubr.bf16.mxu0 0
      %731 = vmatmul.mubr.bf16.gmra.mxu0 %v585
      %v732 = vpop.f32.mrf.mxu0
      %v733 = vadd.f32 %v544, %v732
      %v734 = vpop.f32.mrf.mxu0
      %v735 = vpop.f32.mrf.mxu0
      %v736 = vadd.f32 %v544, %v735
      %v737 = vpop.f32.mrf.mxu0
      %738 = vdwg.mxu0
      %v739 = vpack.c.bf16 %v680, %v677
      %v740 = vpack.c.bf16 %v688, %v685
      %v741 = vpack.c.bf16 %v696, %v693
      %v742 = vpack.c.bf16 %v704, %v701
      %v743 = vpack.c.bf16 %v712, %v709
      %v744 = vpack.c.bf16 %v720, %v717
      %v745 = vpack.c.bf16 %v728, %v725
      %v746 = vpack.c.bf16 %v736, %v733
      %v755 = vunpack.c.l.b16 %v739
      %v756 = vunpack.c.h.b16 %v739
      %v757 = vunpack.c.l.b16 %v740
      %v758 = vunpack.c.h.b16 %v740
      %v759 = vunpack.c.l.b16 %v741
      %v760 = vunpack.c.h.b16 %v741
      %v761 = vunpack.c.l.b16 %v742
      %v762 = vunpack.c.h.b16 %v742
      %v763 = vunpack.c.l.b16 %v743
      %v764 = vunpack.c.h.b16 %v743
      %v765 = vunpack.c.l.b16 %v744
      %v766 = vunpack.c.h.b16 %v744
      %v767 = vunpack.c.l.b16 %v745
      %v768 = vunpack.c.h.b16 %v745
      %v769 = vunpack.c.l.b16 %v746
      %v770 = vunpack.c.h.b16 %v746
      %v771 = vpack.c.b16 %v755, %v755
      %v772 = vpack.c.b16 %v756, %v756
      %v773 = vpack.c.b16 %v757, %v757
      %v774 = vpack.c.b16 %v758, %v758
      %v775 = vpack.c.b16 %v759, %v759
      %v776 = vpack.c.b16 %v760, %v760
      %v777 = vpack.c.b16 %v761, %v761
      %v778 = vpack.c.b16 %v762, %v762
      %v779 = vpack.c.b16 %v763, %v763
      %v780 = vpack.c.b16 %v764, %v764
      %v781 = vpack.c.b16 %v765, %v765
      %v782 = vpack.c.b16 %v766, %v766
      %v783 = vpack.c.b16 %v767, %v767
      %v784 = vpack.c.b16 %v768, %v768
      %v785 = vpack.c.b16 %v769, %v769
      %v786 = vpack.c.b16 %v770, %v770
      %803 = vst [vmem:[%s295] sm:$0xf] %v771
      %804 = vst [vmem:[%s295 + $0x4] sm:$0xf] %v772
      %805 = vst [vmem:[%s295 + $0x8] sm:$0xf] %v773
      %806 = vst [vmem:[%s295 + $0xc] sm:$0xf] %v774
      %807 = vst [vmem:[%s295 + $0x10] sm:$0xf] %v775
      %808 = vst [vmem:[%s295 + $0x14] sm:$0xf] %v776
      %809 = vst [vmem:[%s295 + $0x18] sm:$0xf] %v777
      %810 = vst [vmem:[%s295 + $0x1c] sm:$0xf] %v778
      %811 = vst [vmem:[%s295 + $0x20] sm:$0xf] %v779
      %812 = vst [vmem:[%s295 + $0x24] sm:$0xf] %v780
      %813 = vst [vmem:[%s295 + $0x28] sm:$0xf] %v781
      %814 = vst [vmem:[%s295 + $0x2c] sm:$0xf] %v782
      %815 = vst [vmem:[%s295 + $0x30] sm:$0xf] %v783
      %816 = vst [vmem:[%s295 + $0x34] sm:$0xf] %v784
      %817 = vst [vmem:[%s295 + $0x38] sm:$0xf] %v785
      %818 = vst [vmem:[%s295 + $0x3c] sm:$0xf] %v786
      %s819 = smul.u32 8, %s21
      %p820 = scmp.lt.s32.totalorder %s20, 1
      %s821 = scalar_select %p820, %s20, 1
      %p822 = scmp.lt.s32.totalorder %s819, 7
      %s823 = scalar_select %p822, %s819, 7
      %p824 = scmp.lt.s32.totalorder %s22, 0
      %s825 = scalar_select %p824, %s22, 0
      %s826 = smul.addr %s823, 2
      %s827 = sadd.s32 %s825, %s826
      %s828 = smul.addr %s821, 16
      %s829 = sadd.s32 %s827, %s828
      %s830 = smul.addr %s829, 4
      %s831 = scalar_lea.vmem %s4, %s830
      // Predicated region
      $region41: #{joiner_forward.1} parent=35 // pred_check
        %p832 = pneg %p162
      $region42: #{joiner_forward.1} parent=35 // pred_check_branch
        %834 = sbr.rel (%p832) target = $region44
      $region43: #{joiner_forward.1} parent=35 // pred_region
        %s835 = smul.u32 8, %s21
      $region44: #{joiner_forward.1} parent=35 // pred_fallthru
        _
    $region36: #{joiner_forward.1} parent=5 // pred_fallthru
      _
    %p836 = scmp.le.s32.totalorder 2, %s10
    // Predicated region
    $region45: #{joiner_forward.1} parent=5 // pred_check
      %p837 = pneg %p836
    $region46: #{joiner_forward.1} parent=5 // pred_check_branch
      %839 = sbr.rel (%p837) target = $region48
    $region47: #{joiner_forward.1} parent=5 // pred_region
      %s840 = ssub.s32 %s10, 2
      // Predicated region
      $region49: #{joiner_forward.1} parent=47 // pred_check
        %p841 = pneg %p168
      $region50: #{joiner_forward.1} parent=47 // pred_check_branch
        %843 = sbr.rel (%p841) target = $region52
      $region51: #{joiner_forward.1} parent=47 // pred_region
        %s844 = smul.u32 8, %s24
        %p845 = scmp.lt.s32.totalorder %s23, 1
        %s846 = scalar_select %p845, %s23, 1
        %p847 = scmp.lt.s32.totalorder %s844, 7
        %s848 = scalar_select %p847, %s844, 7
        %p849 = scmp.lt.s32.totalorder %s25, 0
        %s850 = scalar_select %p849, %s25, 0
        %s851 = smul.addr %s848, 2
        %s852 = sadd.s32 %s850, %s851
        %s853 = smul.addr %s846, 16
        %s854 = sadd.s32 %s852, %s853
        %s855 = smul.addr %s854, 4
        %s856 = scalar_lea.vmem %s4, %s855
      $region52: #{joiner_forward.1} parent=47 // pred_fallthru
        _
    $region48: #{joiner_forward.1} parent=5 // pred_fallthru
      _
  $region6: #{joiner_forward.1} parent=0 // loop_footer
    %s14 = sadd.s32 1, %s10
  $region7: #{joiner_forward.1} parent=0 // loop_footer_branch
    %9 = sbr.rel target = $region3
  $region8: #{joiner_forward.1} parent=0 // loop_exit
    _

</llo_original>
